<compile_context>
chip_gen: v7x
topology: tpu7x:2x2x1
jax: 0.10.0
libtpu: 0.0.40
codegen_flags: <defaults>
</compile_context>

<pallas_src>
import functools

import numpy as np
import jax
import jax.numpy as jnp
from jax.experimental import pallas as pl
from jax.experimental.pallas import tpu as pltpu

LOG_STD_MAX = 2.0
LOG_STD_MIN = -20.0
_LOG_2PI = float(np.log(2.0 * np.pi))
_LOG_2 = float(np.log(2.0))


def _actor_kernel(act_limit, act_dim,
                  obs_ref, eps_ref,
                  w1_ref, b1_ref, w2_ref, b2_ref, wh_ref, bh_ref,
                  out_ref):
    # obs arrives in its natural [TB, obs_dim] layout; everything below runs
    # with BATCH ON LANES ([features, TB]) so the tiny feature dims sit on
    # sublanes and the heavy per-action elementwise/EUP math is lane-dense.
    obs = obs_ref[...]                                    # [TB, obs_dim]
    epsT = eps_ref[...]                                   # [act_dim, TB]

    # --- MLP trunk: h = ReLU(W @ obs^T + b).  Layer 1 contracts the last dims
    # of both operands (A @ B^T) so obs is never explicitly transposed.
    h1 = jax.lax.dot_general(w1_ref[...], obs, (((1,), (1,)), ((), ())),
                             preferred_element_type=jnp.float32) + b1_ref[...]
    h1 = jnp.maximum(h1, 0.0)                             # [H1, TB]
    h2 = jnp.dot(w2_ref[...], h1,
                 preferred_element_type=jnp.float32) + b2_ref[...]
    h2 = jnp.maximum(h2, 0.0)                             # [H2, TB]

    # --- fused mu / log_std head: one [2*act_dim, H2] matmul ---
    head = jnp.dot(wh_ref[...], h2,
                   preferred_element_type=jnp.float32) + bh_ref[...]
    mu = head[:act_dim, :]                                # [A, TB]
    log_std = jnp.clip(head[act_dim:, :], LOG_STD_MIN, LOG_STD_MAX)
    std = jnp.exp(log_std)

    # --- reparameterized sample (Normal.rsample) ---
    pi = mu + std * epsT

    # --- Normal log-prob at pi: z == eps by construction (no divide) ---
    log_prob = -0.5 * (epsT * epsT) - log_std - 0.5 * _LOG_2PI

    # --- tanh-squash correction as written in SpinningUp:
    #     2*(log 2 - pi - softplus(-2*pi)), numerically-stable softplus ---
    t = -2.0 * pi
    softplus_t = jnp.maximum(t, 0.0) + jnp.log1p(jnp.exp(-jnp.abs(t)))
    corr = 2.0 * (_LOG_2 - pi - softplus_t)

    # Single fused cross-sublane reduction over the action dim.
    logp_pi = jnp.sum(log_prob - corr, axis=0, keepdims=True)    # [1, TB]

    # --- exact sigmoid squash (0.5*tanh(0.5x)+0.5: one EUP op, no approx) ---
    act = act_limit * (0.5 * jnp.tanh(0.5 * pi) + 0.5)           # [A, TB]

    # Merged lane-dense output tile: rows [0:A) = action, row A = logp,
    # remaining rows zero-padded -> full 8-sublane stores, one DMA per step.
    out_ref[0:act_dim, :] = act.astype(out_ref.dtype)
    out_ref[act_dim:act_dim + 1, :] = logp_pi.astype(out_ref.dtype)
    pad = out_ref.shape[0] - (act_dim + 1)
    if pad > 0:
        out_ref[act_dim + 1:, :] = jnp.zeros((pad, out_ref.shape[1]),
                                             out_ref.dtype)


def _round_up(x, m):
    return ((x + m - 1) // m) * m


def _pick_tile(batch, block_b):
    """Lane-dense batch tile: full-extent block for small batches, otherwise a
    multiple-of-128 tile <= block_b with >=2 grid steps so the 'parallel' batch
    axis can split across both v7x TensorCores."""
    if batch <= min(block_b, 1024):
        return batch
    tile = max(128, (block_b // 128) * 128)       # (8,128)-legal streamed tile
    half = _round_up((batch + 1) // 2, 128)       # guarantees >= 2 grid steps
    return min(tile, half)


def squashed_gaussian_actor(obs, params, eps_fm, act_limit, *, block_b=2048):
    """obs: [B, obs_dim] f32 (natural layout, straight from the environment).
    eps_fm: [act_dim, B] f32 standard-normal noise, FEATURE-MAJOR (the noise is
    internal to the module, so the producer emits it lane-friendly directly —
    no transpose pass anywhere).

    params hold weights in PyTorch layout [out, in] and biases as [out, 1].
    Returns (action [B, act_dim], logp [B]).
    """
    B, obs_dim = obs.shape
    act_dim = eps_fm.shape[0]
    h1 = params["w1"].shape[0]
    h2 = params["w2"].shape[0]

    # Fuse the two heads in the wrapper: [2*act_dim, H2] and [2*act_dim, 1].
    w_head = jnp.concatenate([params["wmu"], params["wls"]], axis=0)
    b_head = jnp.concatenate([params["bmu"], params["bls"]], axis=0)

    out_rows = _round_up(act_dim + 1, 8)          # act rows + logp row + pad
    TB = _pick_tile(B, block_b)
    grid = (pl.cdiv(B, TB),)

    resident = lambda i: (0, 0)                   # weights/biases stay in VMEM

    kernel = functools.partial(_actor_kernel, float(act_limit), act_dim)

    out = pl.pallas_call(
        kernel,
        out_shape=jax.ShapeDtypeStruct((out_rows, B), jnp.float32),
        grid_spec=pltpu.PrefetchScalarGridSpec(
            num_scalar_prefetch=0,
            grid=grid,
            in_specs=[
                pl.BlockSpec((TB, obs_dim), lambda i: (i, 0)),     # obs (natural)
                pl.BlockSpec((act_dim, TB), lambda i: (0, i)),     # eps (feature-major)
                pl.BlockSpec((h1, obs_dim), resident),             # W1
                pl.BlockSpec((h1, 1), resident),                   # b1
                pl.BlockSpec((h2, h1), resident),                  # W2
                pl.BlockSpec((h2, 1), resident),                   # b2
                pl.BlockSpec((2 * act_dim, h2), resident),         # W_head
                pl.BlockSpec((2 * act_dim, 1), resident),          # b_head
            ],
            out_specs=pl.BlockSpec((out_rows, TB), lambda i: (0, i)),
        ),
        compiler_params=pltpu.CompilerParams(
            dimension_semantics=("parallel",)),    # batch axis: megacore-shardable
    )(obs, eps_fm, params["w1"], params["b1"], params["w2"], params["b2"],
      w_head, b_head)

    # Only remaining layout fix-up: transpose the small action rows back to
    # the module's [B, act_dim] convention; logp is a free row slice.
    act = out[:act_dim, :].T                       # [B, act_dim]
    logp = out[act_dim, :]                         # [B]
    return act, logp


def init_params(key, obs_dim, hidden_sizes, act_dim):
    """Deterministic synthetic parameters (PyTorch [out, in] layout)."""
    h1, h2 = hidden_sizes
    keys = jax.random.split(key, 8)
    p = {}
    p["w1"] = 0.1 * jax.random.normal(keys[0], (h1, obs_dim), jnp.float32)
    p["b1"] = 0.1 * jax.random.normal(keys[1], (h1, 1), jnp.float32)
    p["w2"] = 0.1 * jax.random.normal(keys[2], (h2, h1), jnp.float32)
    p["b2"] = 0.1 * jax.random.normal(keys[3], (h2, 1), jnp.float32)
    p["wmu"] = 0.1 * jax.random.normal(keys[4], (act_dim, h2), jnp.float32)
    p["bmu"] = 0.1 * jax.random.normal(keys[5], (act_dim, 1), jnp.float32)
    p["wls"] = 0.1 * jax.random.normal(keys[6], (act_dim, h2), jnp.float32)
    p["bls"] = 0.1 * jax.random.normal(keys[7], (act_dim, 1), jnp.float32)
    return p


def _reference(obs, p, eps, act_limit):
    """Pure-JAX reference of the PyTorch forward (eps in natural [B, A])."""
    h1 = jnp.maximum(obs @ p["w1"].T + p["b1"].T, 0.0)
    h2 = jnp.maximum(h1 @ p["w2"].T + p["b2"].T, 0.0)
    mu = h2 @ p["wmu"].T + p["bmu"].T
    log_std = jnp.clip(h2 @ p["wls"].T + p["bls"].T, LOG_STD_MIN, LOG_STD_MAX)
    std = jnp.exp(log_std)
    pi = mu + std * eps
    logp = jnp.sum(jax.scipy.stats.norm.logpdf(pi, mu, std), axis=-1)
    logp -= jnp.sum(2.0 * (jnp.log(2.0) - pi - jax.nn.softplus(-2.0 * pi)),
                    axis=-1)
    return act_limit * jax.nn.sigmoid(pi), logp


if __name__ == "__main__":
    # TODO(synk): deterministic=True / with_logprob=False variants are trivial
    # eps=0 / skip-logp specializations; only the default path is kernelized.
    obs_dim, act_dim = 16, 4
    hidden_sizes = (32, 32)
    act_limit = 2.0

    key = jax.random.PRNGKey(0)
    k_params, k_data = jax.random.split(key, 2)
    params = init_params(k_params, obs_dim, hidden_sizes, act_dim)

    # Case 1: tiny batch (single full-extent block).
    # Case 2: multi-step grid with a small tile (TB=128, 2 steps).
    # Case 3: large batch at the new default tile (TB=2048, 2 parallel steps).
    for batch, block_b in ((8, 2048), (256, 128), (4096, 2048)):
        k_o, k_e = jax.random.split(jax.random.fold_in(k_data, batch), 2)
        obs = jax.random.normal(k_o, (batch, obs_dim), jnp.float32)
        # Noise generated feature-major: [act_dim, B] (lane-dense stream).
        eps_fm = jax.random.normal(k_e, (act_dim, batch), jnp.float32)

        act, logp = squashed_gaussian_actor(obs, params, eps_fm, act_limit,
                                            block_b=block_b)
        jax.block_until_ready((act, logp))

        ref_act, ref_logp = _reference(obs, params, eps_fm.T, act_limit)
        # Exact (tanh-based) sigmoid squash -> tight tolerance on actions too.
        np.testing.assert_allclose(np.asarray(act), np.asarray(ref_act),
                                   rtol=5e-4, atol=5e-4)
        # logp path is exact f32 math (z == eps, no approx ops) -> tight tol.
        np.testing.assert_allclose(np.asarray(logp), np.asarray(ref_logp),
                                   rtol=1e-4, atol=1e-4)

    print("KERNEL_OK")
</pallas_src>

<mosaic_0001>
module attributes {stable_mosaic.version = 11 : i64} {
  func.func @_actor_kernel(%arg0: i32, %arg1: memref<8x16xf32, #tpu.memory_space<vmem>>, %arg2: memref<4x8xf32, #tpu.memory_space<vmem>>, %arg3: memref<32x16xf32, #tpu.memory_space<vmem>>, %arg4: memref<32x1xf32, #tpu.memory_space<vmem>>, %arg5: memref<32x32xf32, #tpu.memory_space<vmem>>, %arg6: memref<32x1xf32, #tpu.memory_space<vmem>>, %arg7: memref<8x32xf32, #tpu.memory_space<vmem>>, %arg8: memref<8x1xf32, #tpu.memory_space<vmem>>, %arg9: memref<8x8xf32, #tpu.memory_space<vmem>>) attributes {dimension_semantics = [#tpu.dimension_semantics<parallel>], iteration_bounds = array<i64: 1>, scalar_prefetch = 0 : i64, scratch_operands = 0 : i64, tpu.core_type = #tpu.core_type<tc>, window_params = [{transform_indices = @transform_0, window_bounds = array<i64: 8, 16>}, {transform_indices = @transform_1, window_bounds = array<i64: 4, 8>}, {pipeline_mode = #tpu.pipeline_mode<synchronous>, transform_indices = @transform_2, window_bounds = array<i64: 32, 16>}, {pipeline_mode = #tpu.pipeline_mode<synchronous>, transform_indices = @transform_3, window_bounds = array<i64: 32, 1>}, {pipeline_mode = #tpu.pipeline_mode<synchronous>, transform_indices = @transform_4, window_bounds = array<i64: 32, 32>}, {pipeline_mode = #tpu.pipeline_mode<synchronous>, transform_indices = @transform_5, window_bounds = array<i64: 32, 1>}, {pipeline_mode = #tpu.pipeline_mode<synchronous>, transform_indices = @transform_6, window_bounds = array<i64: 8, 32>}, {pipeline_mode = #tpu.pipeline_mode<synchronous>, transform_indices = @transform_7, window_bounds = array<i64: 8, 1>}, {transform_indices = @transform_8, window_bounds = array<i64: 8, 8>}]} {
    %c0 = arith.constant 0 : index
    %c0_0 = arith.constant 0 : index
    %0 = vector.load %arg1[%c0, %c0_0] : memref<8x16xf32, #tpu.memory_space<vmem>>, vector<8x16xf32>
    %c0_1 = arith.constant 0 : index
    %c0_2 = arith.constant 0 : index
    %1 = vector.load %arg2[%c0_1, %c0_2] : memref<4x8xf32, #tpu.memory_space<vmem>>, vector<4x8xf32>
    %c0_3 = arith.constant 0 : index
    %c0_4 = arith.constant 0 : index
    %2 = vector.load %arg3[%c0_3, %c0_4] : memref<32x16xf32, #tpu.memory_space<vmem>>, vector<32x16xf32>
    %cst = arith.constant dense<0.000000e+00> : vector<32x8xf32>
    %3 = tpu.matmul %2, %0, %cst {dimension_numbers = #tpu.dot_dimension_numbers<[1], [1], [0], [0], [0, 0, 1, 0], [], []>} : vector<32x16xf32>, vector<8x16xf32>, vector<32x8xf32> -> vector<32x8xf32>
    %c0_5 = arith.constant 0 : index
    %c0_6 = arith.constant 0 : index
    %4 = vector.load %arg4[%c0_5, %c0_6] : memref<32x1xf32, #tpu.memory_space<vmem>>, vector<32x1xf32>
    %5 = vector.broadcast %4 : vector<32x1xf32> to vector<32x8xf32>
    %6 = arith.addf %3, %5 : vector<32x8xf32>
    %cst_7 = arith.constant 0.000000e+00 : f32
    %7 = vector.broadcast %cst_7 : f32 to vector<32x8xf32>
    %8 = arith.maximumf %6, %7 : vector<32x8xf32>
    %c0_8 = arith.constant 0 : index
    %c0_9 = arith.constant 0 : index
    %9 = vector.load %arg5[%c0_8, %c0_9] : memref<32x32xf32, #tpu.memory_space<vmem>>, vector<32x32xf32>
    %cst_10 = arith.constant dense<0.000000e+00> : vector<32x8xf32>
    %10 = tpu.matmul %9, %8, %cst_10 {dimension_numbers = #tpu.dot_dimension_numbers<[1], [0], [0], [1], [0, 0, 1, 1], [], []>} : vector<32x32xf32>, vector<32x8xf32>, vector<32x8xf32> -> vector<32x8xf32>
    %c0_11 = arith.constant 0 : index
    %c0_12 = arith.constant 0 : index
    %11 = vector.load %arg6[%c0_11, %c0_12] : memref<32x1xf32, #tpu.memory_space<vmem>>, vector<32x1xf32>
    %12 = vector.broadcast %11 : vector<32x1xf32> to vector<32x8xf32>
    %13 = arith.addf %10, %12 : vector<32x8xf32>
    %cst_13 = arith.constant 0.000000e+00 : f32
    %14 = vector.broadcast %cst_13 : f32 to vector<32x8xf32>
    %15 = arith.maximumf %13, %14 : vector<32x8xf32>
    %c0_14 = arith.constant 0 : index
    %c0_15 = arith.constant 0 : index
    %16 = vector.load %arg7[%c0_14, %c0_15] : memref<8x32xf32, #tpu.memory_space<vmem>>, vector<8x32xf32>
    %cst_16 = arith.constant dense<0.000000e+00> : vector<8x8xf32>
    %17 = tpu.matmul %16, %15, %cst_16 {dimension_numbers = #tpu.dot_dimension_numbers<[1], [0], [0], [1], [0, 0, 1, 1], [], []>} : vector<8x32xf32>, vector<32x8xf32>, vector<8x8xf32> -> vector<8x8xf32>
    %c0_17 = arith.constant 0 : index
    %c0_18 = arith.constant 0 : index
    %18 = vector.load %arg8[%c0_17, %c0_18] : memref<8x1xf32, #tpu.memory_space<vmem>>, vector<8x1xf32>
    %19 = vector.broadcast %18 : vector<8x1xf32> to vector<8x8xf32>
    %20 = arith.addf %17, %19 : vector<8x8xf32>
    %21 = vector.extract_strided_slice %20 {offsets = [0, 0], sizes = [4, 8], strides = [1, 1]} : vector<8x8xf32> to vector<4x8xf32>
    %22 = vector.extract_strided_slice %20 {offsets = [4, 0], sizes = [4, 8], strides = [1, 1]} : vector<8x8xf32> to vector<4x8xf32>
    %cst_19 = arith.constant -2.000000e+01 : f32
    %cst_20 = arith.constant 2.000000e+00 : f32
    %23 = vector.broadcast %cst_19 : f32 to vector<4x8xf32>
    %24 = arith.maximumf %23, %22 : vector<4x8xf32>
    %25 = vector.broadcast %cst_20 : f32 to vector<4x8xf32>
    %26 = arith.minimumf %25, %24 : vector<4x8xf32>
    %27 = math.exp %26 : vector<4x8xf32>
    %28 = arith.mulf %27, %1 : vector<4x8xf32>
    %29 = arith.addf %21, %28 : vector<4x8xf32>
    %30 = arith.mulf %1, %1 : vector<4x8xf32>
    %cst_21 = arith.constant -5.000000e-01 : f32
    %31 = vector.broadcast %cst_21 : f32 to vector<4x8xf32>
    %32 = arith.mulf %31, %30 : vector<4x8xf32>
    %33 = arith.subf %32, %26 : vector<4x8xf32>
    %cst_22 = arith.constant 0.918938517 : f32
    %34 = vector.broadcast %cst_22 : f32 to vector<4x8xf32>
    %35 = arith.subf %33, %34 : vector<4x8xf32>
    %cst_23 = arith.constant -2.000000e+00 : f32
    %36 = vector.broadcast %cst_23 : f32 to vector<4x8xf32>
    %37 = arith.mulf %36, %29 : vector<4x8xf32>
    %cst_24 = arith.constant 0.000000e+00 : f32
    %38 = vector.broadcast %cst_24 : f32 to vector<4x8xf32>
    %39 = arith.maximumf %37, %38 : vector<4x8xf32>
    %40 = math.absf %37 : vector<4x8xf32>
    %cst_25 = arith.constant 0.000000e+00 : f32
    %41 = vector.broadcast %cst_25 : f32 to vector<4x8xf32>
    %42 = arith.subf %41, %40 : vector<4x8xf32>
    %43 = math.exp %42 : vector<4x8xf32>
    %44 = math.log1p %43 : vector<4x8xf32>
    %45 = arith.addf %39, %44 : vector<4x8xf32>
    %cst_26 = arith.constant 0.693147182 : f32
    %46 = vector.broadcast %cst_26 : f32 to vector<4x8xf32>
    %47 = arith.subf %46, %29 : vector<4x8xf32>
    %48 = arith.subf %47, %45 : vector<4x8xf32>
    %cst_27 = arith.constant 2.000000e+00 : f32
    %49 = vector.broadcast %cst_27 : f32 to vector<4x8xf32>
    %50 = arith.mulf %49, %48 : vector<4x8xf32>
    %51 = arith.subf %35, %50 : vector<4x8xf32>
    %cst_28 = arith.constant dense<0.000000e+00> : vector<8xf32>
    %52 = vector.multi_reduction <add>, %51, %cst_28 [0] : vector<4x8xf32> to vector<8xf32>
    %53 = vector.shape_cast %52 : vector<8xf32> to vector<1x8xf32>
    %cst_29 = arith.constant 5.000000e-01 : f32
    %54 = vector.broadcast %cst_29 : f32 to vector<4x8xf32>
    %55 = arith.mulf %54, %29 : vector<4x8xf32>
    %56 = math.tanh %55 : vector<4x8xf32>
    %cst_30 = arith.constant 5.000000e-01 : f32
    %57 = vector.broadcast %cst_30 : f32 to vector<4x8xf32>
    %58 = arith.mulf %57, %56 : vector<4x8xf32>
    %cst_31 = arith.constant 5.000000e-01 : f32
    %59 = vector.broadcast %cst_31 : f32 to vector<4x8xf32>
    %60 = arith.addf %58, %59 : vector<4x8xf32>
    %cst_32 = arith.constant 2.000000e+00 : f32
    %61 = vector.broadcast %cst_32 : f32 to vector<4x8xf32>
    %62 = arith.mulf %61, %60 : vector<4x8xf32>
    %c0_33 = arith.constant 0 : index
    %c0_34 = arith.constant 0 : index
    %63 = vector.load %arg9[%c0_33, %c0_34] : memref<8x8xf32, #tpu.memory_space<vmem>>, vector<4x8xf32>
    tpu.vector_store %arg9[%c0_33, %c0_34], %62 {strides = array<i32>} : memref<8x8xf32, #tpu.memory_space<vmem>>, vector<4x8xf32>,
    %c4 = arith.constant 4 : index
    %c0_35 = arith.constant 0 : index
    %64 = vector.load %arg9[%c4, %c0_35] : memref<8x8xf32, #tpu.memory_space<vmem>>, vector<1x8xf32>
    tpu.vector_store %arg9[%c4, %c0_35], %53 {strides = array<i32>} : memref<8x8xf32, #tpu.memory_space<vmem>>, vector<1x8xf32>,
    %cst_36 = arith.constant 0.000000e+00 : f32
    %65 = vector.broadcast %cst_36 : f32 to vector<3x8xf32>
    %c5 = arith.constant 5 : index
    %c0_37 = arith.constant 0 : index
    %66 = vector.load %arg9[%c5, %c0_37] : memref<8x8xf32, #tpu.memory_space<vmem>>, vector<3x8xf32>
    tpu.vector_store %arg9[%c5, %c0_37], %65 {strides = array<i32>} : memref<8x8xf32, #tpu.memory_space<vmem>>, vector<3x8xf32>,
    return
  }
  func.func @transform_0(%arg0: i32) -> (i32, i32) {
    %c0_i32 = arith.constant 0 : i32
    %c0_i32_0 = arith.constant 0 : i32
    return %arg0, %c0_i32 : i32, i32
  }
  func.func @transform_1(%arg0: i32) -> (i32, i32) {
    %c0_i32 = arith.constant 0 : i32
    %c0_i32_0 = arith.constant 0 : i32
    return %c0_i32, %arg0 : i32, i32
  }
  func.func @transform_2(%arg0: i32) -> (i32, i32) {
    %c0_i32 = arith.constant 0 : i32
    %c0_i32_0 = arith.constant 0 : i32
    %c0_i32_1 = arith.constant 0 : i32
    return %c0_i32, %c0_i32_0 : i32, i32
  }
  func.func @transform_3(%arg0: i32) -> (i32, i32) {
    %c0_i32 = arith.constant 0 : i32
    %c0_i32_0 = arith.constant 0 : i32
    %c0_i32_1 = arith.constant 0 : i32
    return %c0_i32, %c0_i32_0 : i32, i32
  }
  func.func @transform_4(%arg0: i32) -> (i32, i32) {
    %c0_i32 = arith.constant 0 : i32
    %c0_i32_0 = arith.constant 0 : i32
    %c0_i32_1 = arith.constant 0 : i32
    return %c0_i32, %c0_i32_0 : i32, i32
  }
  func.func @transform_5(%arg0: i32) -> (i32, i32) {
    %c0_i32 = arith.constant 0 : i32
    %c0_i32_0 = arith.constant 0 : i32
    %c0_i32_1 = arith.constant 0 : i32
    return %c0_i32, %c0_i32_0 : i32, i32
  }
  func.func @transform_6(%arg0: i32) -> (i32, i32) {
    %c0_i32 = arith.constant 0 : i32
    %c0_i32_0 = arith.constant 0 : i32
    %c0_i32_1 = arith.constant 0 : i32
    return %c0_i32, %c0_i32_0 : i32, i32
  }
  func.func @transform_7(%arg0: i32) -> (i32, i32) {
    %c0_i32 = arith.constant 0 : i32
    %c0_i32_0 = arith.constant 0 : i32
    %c0_i32_1 = arith.constant 0 : i32
    return %c0_i32, %c0_i32_0 : i32, i32
  }
  func.func @transform_8(%arg0: i32) -> (i32, i32) {
    %c0_i32 = arith.constant 0 : i32
    %c0_i32_0 = arith.constant 0 : i32
    return %c0_i32, %arg0 : i32, i32
  }
}

</mosaic_0001>

<llo_original>
// kernel: tpu_custom_call.1
$region0: #{tpu_custom_call.1}
  #allocation0 [shape = 'u32[]', space=smem, size = 0x4, offset = 0x4, fixed_abs, tag = 'smem constant byte address 0x4 - core index']
  #allocation1 [shape = 'u32[144,128]{1,0:T(1,128)}', space=vmem, size = 0x12000, scoped, tag = 'internal scratch']
  %s0 = inlined_call_operand.vmem [shape: f32[8,16], index: 0, kind: input, shape index: {}]
  %s1 = inlined_call_operand.vmem [shape: f32[4,8], index: 1, kind: input, shape index: {}]
  %s2 = inlined_call_operand.vmem [shape: f32[32,16], index: 2, kind: input, shape index: {}]
  %s3 = inlined_call_operand.vmem [shape: f32[32,1], index: 3, kind: input, shape index: {}]
  %s4 = inlined_call_operand.vmem [shape: f32[32,32], index: 4, kind: input, shape index: {}]
  %s5 = inlined_call_operand.vmem [shape: f32[32,1], index: 5, kind: input, shape index: {}]
  %s6 = inlined_call_operand.vmem [shape: f32[8,32], index: 6, kind: input, shape index: {}]
  %s7 = inlined_call_operand.vmem [shape: f32[8,1], index: 7, kind: input, shape index: {}]
  %s8 = inlined_call_operand.hbm [shape: f32[8,8], index: 8, kind: output, shape index: {}]
  %s9 = sld [smem:[#allocation0]]
  $region42: #{tpu_custom_call.1} parent=0
    _
  %s11 = ssub.s32 1, %s9
  %s12 = scalar_select 0, %s11, %s9
  $region1: #{tpu_custom_call.1} parent=0
    #allocation2 [shape = 'u8[4096]{0}', space=vmem, size = 0x1000, scoped, tag = 'output window, operand 0, single buffered']
    #allocation3 [shape = 's32[1]{0}', space=sflag, size = 0x4, scoped, tag = 'scoped memory for tpu_custom_call.1']
    %13 = vsyncpa [#allocation3], 0
    // Predicated region
    $region2: #{tpu_custom_call.1} parent=1 // pred_check
      _
    $region3: #{tpu_custom_call.1} parent=1 // pred_check_branch
      %15 = sbr.rel (0) target = $region5
    $region4: #{tpu_custom_call.1} parent=1 // pred_region
      _
    $region5: #{tpu_custom_call.1} parent=1 // pred_fallthru
      _
    // Predicated region
    $region6: #{tpu_custom_call.1} parent=1 // pred_check
      _
    $region7: #{tpu_custom_call.1} parent=1 // pred_check_branch
      %17 = sbr.rel (0) target = $region9
    $region8: #{tpu_custom_call.1} parent=1 // pred_region
      _
    $region9: #{tpu_custom_call.1} parent=1 // pred_fallthru
      _
    // Predicated region
    $region10: #{tpu_custom_call.1} parent=1 // pred_check
      _
    $region11: #{tpu_custom_call.1} parent=1 // pred_check_branch
      %19 = sbr.rel (0) target = $region13
    $region12: #{tpu_custom_call.1} parent=1 // pred_region
      _
    $region13: #{tpu_custom_call.1} parent=1 // pred_fallthru
      _
    // Predicated region
    $region14: #{tpu_custom_call.1} parent=1 // pred_check
      _
    $region15: #{tpu_custom_call.1} parent=1 // pred_check_branch
      %21 = sbr.rel (0) target = $region17
    $region16: #{tpu_custom_call.1} parent=1 // pred_region
      _
    $region17: #{tpu_custom_call.1} parent=1 // pred_fallthru
      _
    // Predicated region
    $region18: #{tpu_custom_call.1} parent=1 // pred_check
      _
    $region19: #{tpu_custom_call.1} parent=1 // pred_check_branch
      %23 = sbr.rel (0) target = $region21
    $region20: #{tpu_custom_call.1} parent=1 // pred_region
      _
    $region21: #{tpu_custom_call.1} parent=1 // pred_fallthru
      _
    // Predicated region
    $region22: #{tpu_custom_call.1} parent=1 // pred_check
      _
    $region23: #{tpu_custom_call.1} parent=1 // pred_check_branch
      %25 = sbr.rel (0) target = $region25
    $region24: #{tpu_custom_call.1} parent=1 // pred_region
      _
    $region25: #{tpu_custom_call.1} parent=1 // pred_fallthru
      _
    // Predicated region
    $region26: #{tpu_custom_call.1} parent=1 // pred_check
      _
    $region27: #{tpu_custom_call.1} parent=1 // pred_check_branch
      %27 = sbr.rel (0) target = $region29
    $region28: #{tpu_custom_call.1} parent=1 // pred_region
      _
    $region29: #{tpu_custom_call.1} parent=1 // pred_fallthru
      _
    // Predicated region
    $region30: #{tpu_custom_call.1} parent=1 // pred_check
      _
    $region31: #{tpu_custom_call.1} parent=1 // pred_check_branch
      %29 = sbr.rel (0) target = $region33
    $region32: #{tpu_custom_call.1} parent=1 // pred_region
      _
    $region33: #{tpu_custom_call.1} parent=1 // pred_fallthru
      _
    %v30 = vld [vmem:[%s0] sm:$0xff]
    %v31 = vld [vmem:[%s1] sm:$0xf]
    %v32 = vld [vmem:[%s2] sm:$0xff]
    %v33 = vld [vmem:[%s2 + $0x8] sm:$0xff]
    %v34 = vld [vmem:[%s2 + $0x10] sm:$0xff]
    %v35 = vld [vmem:[%s2 + $0x18] sm:$0xff]
    %v36 = vld [vmem:[%s3] sm:$0xff]
    %v37 = vld [vmem:[%s3 + $0x8] sm:$0xff]
    %v38 = vld [vmem:[%s3 + $0x10] sm:$0xff]
    %v39 = vld [vmem:[%s3 + $0x18] sm:$0xff]
    %41 = vset.pattern.permute.xlu0 0
    %42 = vperm.xlu0 %41, %v36
    %v43 = vpop.permute.xlu0 %42
    %46 = vset.pattern.permute.xlu0 0
    %47 = vperm.xlu0 %46, %v37
    %v48 = vpop.permute.xlu0 %47
    %51 = vset.pattern.permute.xlu0 0
    %52 = vperm.xlu0 %51, %v38
    %v53 = vpop.permute.xlu0 %52
    %56 = vset.pattern.permute.xlu0 0
    %57 = vperm.xlu0 %56, %v39
    %v58 = vpop.permute.xlu0 %57
    %vm60 = vcmask 130048
    %v62 = vsel %vm60, %v32, 0
    %v65 = vsel %vm60, %v33, 0
    %v68 = vsel %vm60, %v34, 0
    %v71 = vsel %vm60, %v35, 0
    %v74 = vsel %vm60, %v30, 0
    %76 = vmatprep.subr.mxu0 0.0
    %77 = vmatpush1.xpose.msra.mxu0 %v74
    %78 = vmatprep.subr.mxu0 0.0
    %79 = vmatpush1.xpose.msra.mxu0 0.0
    %80 = vmatprep.subr.mxu0 0.0
    %81 = vmatpush1.xpose.msra.mxu0 0.0
    %82 = vmatprep.subr.mxu0 0.0
    %83 = vmatpush1.xpose.msra.mxu0 0.0
    %84 = vmatprep.subr.mxu0 0.0
    %85 = vmatpush1.xpose.msra.mxu0 0.0
    %86 = vmatprep.subr.mxu0 0.0
    %87 = vmatpush1.xpose.msra.mxu0 0.0
    %88 = vmatprep.subr.mxu0 0.0
    %89 = vmatpush1.xpose.msra.mxu0 0.0
    %90 = vmatprep.subr.mxu0 0.0
    %91 = vmatpush1.xpose.msra.mxu0 0.0
    %92 = vmatprep.subr.mxu0 0.0
    %93 = vmatpush1.xpose.msra.mxu0 0.0
    %94 = vmatprep.subr.mxu0 0.0
    %95 = vmatpush1.xpose.msra.mxu0 0.0
    %96 = vmatprep.subr.mxu0 0.0
    %97 = vmatpush1.xpose.msra.mxu0 0.0
    %98 = vmatprep.subr.mxu0 0.0
    %99 = vmatpush1.xpose.msra.mxu0 0.0
    %100 = vmatprep.subr.mxu0 0.0
    %101 = vmatpush1.xpose.msra.mxu0 0.0
    %102 = vmatprep.subr.mxu0 0.0
    %103 = vmatpush1.xpose.msra.mxu0 0.0
    %104 = vmatprep.subr.mxu0 0.0
    %105 = vmatpush1.xpose.msra.mxu0 0.0
    %106 = vmatprep.subr.mxu0 0.0
    %107 = vmatpush1.xpose.msra.mxu0 0.0
    %108 = vmatprep.subr.mxu0 0.0
    %109 = vmatpush1.xpose.msra.mxu0 0.0
    %110 = vmatprep.subr.mxu0 0.0
    %111 = vmatpush1.xpose.msra.mxu0 0.0
    %112 = vmatprep.subr.mxu0 0.0
    %113 = vmatpush1.xpose.msra.mxu0 0.0
    %114 = vmatprep.subr.mxu0 0.0
    %115 = vmatpush1.xpose.msra.mxu0 0.0
    %116 = vmatprep.subr.mxu0 0.0
    %117 = vmatpush1.xpose.msra.mxu0 0.0
    %118 = vmatprep.subr.mxu0 0.0
    %119 = vmatpush1.xpose.msra.mxu0 0.0
    %120 = vmatprep.subr.mxu0 0.0
    %121 = vmatpush1.xpose.msra.mxu0 0.0
    %122 = vmatprep.subr.mxu0 0.0
    %123 = vmatpush1.xpose.msra.mxu0 0.0
    %124 = vmatprep.subr.mxu0 0.0
    %125 = vmatpush1.xpose.msra.mxu0 0.0
    %126 = vmatprep.subr.mxu0 0.0
    %127 = vmatpush1.xpose.msra.mxu0 0.0
    %128 = vmatprep.subr.mxu0 0.0
    %129 = vmatpush1.xpose.msra.mxu0 0.0
    %130 = vmatprep.subr.mxu0 0.0
    %131 = vmatpush1.xpose.msra.mxu0 0.0
    %132 = vmatprep.subr.mxu0 0.0
    %133 = vmatpush1.xpose.msra.mxu0 0.0
    %134 = vmatprep.subr.mxu0 0.0
    %135 = vmatpush1.xpose.msra.mxu0 0.0
    %136 = vmatprep.subr.mxu0 0.0
    %137 = vmatpush1.xpose.msra.mxu0 0.0
    %138 = vmatprep.subr.mxu0 0.0
    %139 = vmatpush1.xpose.msra.mxu0 0.0
    %140 = vmatprep.mubr.f32.mxu0 0.0
    %141 = vmatmul.mubr.f32.gmra.mrb[0].mxu0 %v62
    %v142 = vpop.f32.mrb[0].mxu0
    %v143 = vadd.f32 %v43, %v142
    %v144 = vpop.f32.mrb[0].mxu0
    %145 = vmatprep.mubr.f32.mxu0 0.0
    %146 = vmatmul.mubr.f32.gmra.mrb[0].mxu0 %v65
    %v147 = vpop.f32.mrb[0].mxu0
    %v148 = vadd.f32 %v48, %v147
    %v149 = vpop.f32.mrb[0].mxu0
    %150 = vmatprep.mubr.f32.mxu0 0.0
    %151 = vmatmul.mubr.f32.gmra.mrb[0].mxu0 %v68
    %v152 = vpop.f32.mrb[0].mxu0
    %v153 = vadd.f32 %v53, %v152
    %v154 = vpop.f32.mrb[0].mxu0
    %155 = vmatprep.mubr.f32.mxu0 0.0
    %156 = vmatmul.mubr.f32.gmra.mrb[0].mxu0 %v71
    %v157 = vpop.f32.mrb[0].mxu0
    %v158 = vadd.f32 %v58, %v157
    %v159 = vpop.f32.mrb[0].mxu0
    %160 = vdwg.mxu0
    %v161 = vmax.f32 %v143, 0.0
    %v162 = vmax.f32 %v148, 0.0
    %v163 = vmax.f32 %v153, 0.0
    %v164 = vmax.f32 %v158, 0.0
    %v165 = vld [vmem:[%s4] sm:$0xff]
    %v166 = vld [vmem:[%s4 + $0x8] sm:$0xff]
    %v167 = vld [vmem:[%s4 + $0x10] sm:$0xff]
    %v168 = vld [vmem:[%s4 + $0x18] sm:$0xff]
    %v169 = vld [vmem:[%s5] sm:$0xff]
    %v170 = vld [vmem:[%s5 + $0x8] sm:$0xff]
    %v171 = vld [vmem:[%s5 + $0x10] sm:$0xff]
    %v172 = vld [vmem:[%s5 + $0x18] sm:$0xff]
    %174 = vset.pattern.permute.xlu0 0
    %175 = vperm.xlu0 %174, %v169
    %v176 = vpop.permute.xlu0 %175
    %179 = vset.pattern.permute.xlu0 0
    %180 = vperm.xlu0 %179, %v170
    %v181 = vpop.permute.xlu0 %180
    %184 = vset.pattern.permute.xlu0 0
    %185 = vperm.xlu0 %184, %v171
    %v186 = vpop.permute.xlu0 %185
    %189 = vset.pattern.permute.xlu0 0
    %190 = vperm.xlu0 %189, %v172
    %v191 = vpop.permute.xlu0 %190
    %vm193 = vcmask 261120
    %v195 = vsel %vm193, %v165, 0
    %v198 = vsel %vm193, %v166, 0
    %v201 = vsel %vm193, %v167, 0
    %v204 = vsel %vm193, %v168, 0
    %206 = vmatprep.subr.mxu0 0.0
    %207 = vmatpush1.msra.mxu0 %v161
    %208 = vmatprep.subr.mxu0 0.0
    %209 = vmatpush1.msra.mxu0 %v162
    %210 = vmatprep.subr.mxu0 0.0
    %211 = vmatpush1.msra.mxu0 %v163
    %212 = vmatprep.subr.mxu0 0.0
    %213 = vmatpush1.msra.mxu0 %v164
    %214 = vmatprep.subr.mxu0 0.0
    %215 = vmatpush1.msra.mxu0 0.0
    %216 = vmatprep.subr.mxu0 0.0
    %217 = vmatpush1.msra.mxu0 0.0
    %218 = vmatprep.subr.mxu0 0.0
    %219 = vmatpush1.msra.mxu0 0.0
    %220 = vmatprep.subr.mxu0 0.0
    %221 = vmatpush1.msra.mxu0 0.0
    %222 = vmatprep.subr.mxu0 0.0
    %223 = vmatpush1.msra.mxu0 0.0
    %224 = vmatprep.subr.mxu0 0.0
    %225 = vmatpush1.msra.mxu0 0.0
    %226 = vmatprep.subr.mxu0 0.0
    %227 = vmatpush1.msra.mxu0 0.0
    %228 = vmatprep.subr.mxu0 0.0
    %229 = vmatpush1.msra.mxu0 0.0
    %230 = vmatprep.subr.mxu0 0.0
    %231 = vmatpush1.msra.mxu0 0.0
    %232 = vmatprep.subr.mxu0 0.0
    %233 = vmatpush1.msra.mxu0 0.0
    %234 = vmatprep.subr.mxu0 0.0
    %235 = vmatpush1.msra.mxu0 0.0
    %236 = vmatprep.subr.mxu0 0.0
    %237 = vmatpush1.msra.mxu0 0.0
    %238 = vmatprep.subr.mxu0 0.0
    %239 = vmatpush1.msra.mxu0 0.0
    %240 = vmatprep.subr.mxu0 0.0
    %241 = vmatpush1.msra.mxu0 0.0
    %242 = vmatprep.subr.mxu0 0.0
    %243 = vmatpush1.msra.mxu0 0.0
    %244 = vmatprep.subr.mxu0 0.0
    %245 = vmatpush1.msra.mxu0 0.0
    %246 = vmatprep.subr.mxu0 0.0
    %247 = vmatpush1.msra.mxu0 0.0
    %248 = vmatprep.subr.mxu0 0.0
    %249 = vmatpush1.msra.mxu0 0.0
    %250 = vmatprep.subr.mxu0 0.0
    %251 = vmatpush1.msra.mxu0 0.0
    %252 = vmatprep.subr.mxu0 0.0
    %253 = vmatpush1.msra.mxu0 0.0
    %254 = vmatprep.subr.mxu0 0.0
    %255 = vmatpush1.msra.mxu0 0.0
    %256 = vmatprep.subr.mxu0 0.0
    %257 = vmatpush1.msra.mxu0 0.0
    %258 = vmatprep.subr.mxu0 0.0
    %259 = vmatpush1.msra.mxu0 0.0
    %260 = vmatprep.subr.mxu0 0.0
    %261 = vmatpush1.msra.mxu0 0.0
    %262 = vmatprep.subr.mxu0 0.0
    %263 = vmatpush1.msra.mxu0 0.0
    %264 = vmatprep.subr.mxu0 0.0
    %265 = vmatpush1.msra.mxu0 0.0
    %266 = vmatprep.subr.mxu0 0.0
    %267 = vmatpush1.msra.mxu0 0.0
    %268 = vmatprep.subr.mxu0 0.0
    %269 = vmatpush1.msra.mxu0 0.0
    %270 = vmatprep.mubr.f32.mxu0 0.0
    %271 = vmatmul.mubr.f32.gmra.mrb[0].mxu0 %v195
    %v272 = vpop.f32.mrb[0].mxu0
    %v273 = vadd.f32 %v176, %v272
    %v274 = vpop.f32.mrb[0].mxu0
    %275 = vmatprep.mubr.f32.mxu0 0.0
    %276 = vmatmul.mubr.f32.gmra.mrb[0].mxu0 %v198
    %v277 = vpop.f32.mrb[0].mxu0
    %v278 = vadd.f32 %v181, %v277
    %v279 = vpop.f32.mrb[0].mxu0
    %280 = vmatprep.mubr.f32.mxu0 0.0
    %281 = vmatmul.mubr.f32.gmra.mrb[0].mxu0 %v201
    %v282 = vpop.f32.mrb[0].mxu0
    %v283 = vadd.f32 %v186, %v282
    %v284 = vpop.f32.mrb[0].mxu0
    %285 = vmatprep.mubr.f32.mxu0 0.0
    %286 = vmatmul.mubr.f32.gmra.mrb[0].mxu0 %v204
    %v287 = vpop.f32.mrb[0].mxu0
    %v288 = vadd.f32 %v191, %v287
    %v289 = vpop.f32.mrb[0].mxu0
    %290 = vdwg.mxu0
    %v291 = vmax.f32 %v273, 0.0
    %v292 = vmax.f32 %v278, 0.0
    %v293 = vmax.f32 %v283, 0.0
    %v294 = vmax.f32 %v288, 0.0
    %v295 = vld [vmem:[%s6] sm:$0xff]
    %v296 = vld [vmem:[%s7] sm:$0xff]
    %298 = vset.pattern.permute.xlu0 0
    %299 = vperm.xlu0 %298, %v296
    %v300 = vpop.permute.xlu0 %299
    %v303 = vsel %vm193, %v295, 0
    %305 = vmatprep.subr.mxu0 0.0
    %306 = vmatpush1.msra.mxu0 %v291
    %307 = vmatprep.subr.mxu0 0.0
    %308 = vmatpush1.msra.mxu0 %v292
    %309 = vmatprep.subr.mxu0 0.0
    %310 = vmatpush1.msra.mxu0 %v293
    %311 = vmatprep.subr.mxu0 0.0
    %312 = vmatpush1.msra.mxu0 %v294
    %313 = vmatprep.subr.mxu0 0.0
    %314 = vmatpush1.msra.mxu0 0.0
    %315 = vmatprep.subr.mxu0 0.0
    %316 = vmatpush1.msra.mxu0 0.0
    %317 = vmatprep.subr.mxu0 0.0
    %318 = vmatpush1.msra.mxu0 0.0
    %319 = vmatprep.subr.mxu0 0.0
    %320 = vmatpush1.msra.mxu0 0.0
    %321 = vmatprep.subr.mxu0 0.0
    %322 = vmatpush1.msra.mxu0 0.0
    %323 = vmatprep.subr.mxu0 0.0
    %324 = vmatpush1.msra.mxu0 0.0
    %325 = vmatprep.subr.mxu0 0.0
    %326 = vmatpush1.msra.mxu0 0.0
    %327 = vmatprep.subr.mxu0 0.0
    %328 = vmatpush1.msra.mxu0 0.0
    %329 = vmatprep.subr.mxu0 0.0
    %330 = vmatpush1.msra.mxu0 0.0
    %331 = vmatprep.subr.mxu0 0.0
    %332 = vmatpush1.msra.mxu0 0.0
    %333 = vmatprep.subr.mxu0 0.0
    %334 = vmatpush1.msra.mxu0 0.0
    %335 = vmatprep.subr.mxu0 0.0
    %336 = vmatpush1.msra.mxu0 0.0
    %337 = vmatprep.subr.mxu0 0.0
    %338 = vmatpush1.msra.mxu0 0.0
    %339 = vmatprep.subr.mxu0 0.0
    %340 = vmatpush1.msra.mxu0 0.0
    %341 = vmatprep.subr.mxu0 0.0
    %342 = vmatpush1.msra.mxu0 0.0
    %343 = vmatprep.subr.mxu0 0.0
    %344 = vmatpush1.msra.mxu0 0.0
    %345 = vmatprep.subr.mxu0 0.0
    %346 = vmatpush1.msra.mxu0 0.0
    %347 = vmatprep.subr.mxu0 0.0
    %348 = vmatpush1.msra.mxu0 0.0
    %349 = vmatprep.subr.mxu0 0.0
    %350 = vmatpush1.msra.mxu0 0.0
    %351 = vmatprep.subr.mxu0 0.0
    %352 = vmatpush1.msra.mxu0 0.0
    %353 = vmatprep.subr.mxu0 0.0
    %354 = vmatpush1.msra.mxu0 0.0
    %355 = vmatprep.subr.mxu0 0.0
    %356 = vmatpush1.msra.mxu0 0.0
    %357 = vmatprep.subr.mxu0 0.0
    %358 = vmatpush1.msra.mxu0 0.0
    %359 = vmatprep.subr.mxu0 0.0
    %360 = vmatpush1.msra.mxu0 0.0
    %361 = vmatprep.subr.mxu0 0.0
    %362 = vmatpush1.msra.mxu0 0.0
    %363 = vmatprep.subr.mxu0 0.0
    %364 = vmatpush1.msra.mxu0 0.0
    %365 = vmatprep.subr.mxu0 0.0
    %366 = vmatpush1.msra.mxu0 0.0
    %367 = vmatprep.subr.mxu0 0.0
    %368 = vmatpush1.msra.mxu0 0.0
    %369 = vmatprep.mubr.f32.mxu0 0.0
    %370 = vmatmul.mubr.f32.gmra.mrb[0].mxu0 %v303
    %v371 = vpop.f32.mrb[0].mxu0
    %v372 = vadd.f32 %v300, %v371
    %v373 = vpop.f32.mrb[0].mxu0
    %374 = vdwg.mxu0
    %v375 = vmax.f32 %v372, -20.0
    %v376 = vmin.f32 %v375, 2.0
    %v377 = vmul.f32 %v376, 1.442695
    %v378 = vpow.pop %v377
    %v380 = vrot.slane %v31, 4
    %v382 = vmul.f32 %v378, %v380
    %v384 = vrot.slane %v382, 4
    %v386 = vadd.f32 %v372, %v384
    %v387 = vmul.f32 %v31, %v31
    %v388 = vmul.f32 %v387, -0.5
    %v390 = vrot.slane %v376, 4
    %v392 = vsub.f32 %v388, %v390
    %v393 = vsub.f32 %v392, 0.9189385
    %v394 = vmul.f32 %v386, -2.0
    %v395 = vmax.f32 %v394, 0.0
    %v396 = vand.u32 2147483647, %v394
    %v397 = vsub.f32 0.0, %v396
    %v398 = vmul.f32 %v397, 1.442695
    %v399 = vpow.pop %v398
    %v400 = vadd.f32 %v399, 1.0
    %v401 = vlog2.pop %v400
    %v402 = vmul.f32 %v401, 0.6931472
    %v403 = vmul.f32 -0.5, %v399
    %v404 = vadd.f32 %v403, 1.0
    %v405 = vmul.f32 %v404, %v399
    %v406 = vand.u32 2147483647, %v399
    %vm407 = vcmp.lt.f32.partialorder %v406, 0.0004427343
    %v408 = vsel %vm407, %v405, %v402
    %v409 = vadd.f32 %v395, %v408
    %v410 = vsub.f32 0.6931472, %v386
    %v411 = vsub.f32 %v410, %v409
    %v412 = vmul.f32 %v411, 2.0
    %v413 = vsub.f32 %v393, %v412
    %vm414 = vcmask 60416
    %v415 = vsel %vm414, %v413, 0.0
    %v416 = vrot.slane %v415, 4
    %v417 = vadd.f32 %v415, %v416
    %v418 = vrot.slane %v417, 2
    %v419 = vadd.f32 %v417, %v418
    %v420 = vrot.slane %v419, 1
    %v421 = vadd.f32 %v419, %v420
    %v422 = vmul.f32 %v386, 0.5
    %v423 = vtanh.pop %v422
    %v424 = vmul.f32 %v423, 0.5
    %v425 = vadd.f32 %v424, 0.5
    %v426 = vmul.f32 %v425, 2.0
    %427 = vst.msk [vmem:[#allocation2] sm:$0xf] %vm414, %v426
    %vm428 = vcmask 57344
    %429 = vst.msk [vmem:[#allocation2 + $0x4] sm:$0x1] %vm428, %v421
    %vm430 = vcmask 59392
    %431 = vst.msk [vmem:[#allocation2 + $0x5] sm:$0x7] %vm430, 0.0
    // Predicated region
    $region34: #{tpu_custom_call.1} parent=1 // pred_check
      _
    $region35: #{tpu_custom_call.1} parent=1 // pred_check_branch
      %433 = sbr.rel (0) target = $region37
    $region36: #{tpu_custom_call.1} parent=1 // pred_region
      %s435 = ssub.s32 128, 128
      %436 = vsyncadd [#allocation3], %s435
      %s438 = sshll.u32 [#allocation2], 4
      %s439 = int_to_ptr.vmem [resolvable:$true] %s438
      %441 = dma.vmem_to_hbm [thread:$0]  %s439, 128, %s8, [#allocation3]
    $region37: #{tpu_custom_call.1} parent=1 // pred_fallthru
      _
    // Predicated region
    $region38: #{tpu_custom_call.1} parent=1 // pred_check
      _
    $region39: #{tpu_custom_call.1} parent=1 // pred_check_branch
      %443 = sbr.rel (0) target = $region41
    $region40: #{tpu_custom_call.1} parent=1 // pred_region
      %444 = dma.done [#allocation3], 128
    $region41: #{tpu_custom_call.1} parent=1 // pred_fallthru
      _
    %445 = vsyncpa [#allocation3], 1

</llo_original>
